<compile_context>
chip_gen: v5e
topology: v5e:2x2
jax: 0.10.0
libtpu: 0.0.40
codegen_flags: <defaults>
</compile_context>

<pallas_src>
import jax
import jax.numpy as jnp
from jax.experimental import pallas as pl
from jax.experimental.pallas import tpu as pltpu


def _head_kernel(hs_ref, mask_ref, w_ref, b_ref, out_ref, acc_ref, cnt_ref):
    # hs_ref:  [tB, tS, H]  f32 or bf16 (native dtype, streamed over S)
    # mask_ref:[tB, 1, tS]  int32
    # w_ref:   [H, 2]       f32   (VMEM-resident across all grid steps)
    # b_ref:   [1, 2]       f32   (VMEM-resident across all grid steps)
    # out_ref: [tB, 2]      f32   (resident across the sequence axis)
    # acc_ref: [tB, H] f32 scratch (sum_embeddings accumulator)
    # cnt_ref: [tB, 1] f32 scratch (sum_mask accumulator)
    k = pl.program_id(1)

    @pl.when(k == 0)
    def _init():
        acc_ref[...] = jnp.zeros_like(acc_ref)
        cnt_ref[...] = jnp.zeros_like(cnt_ref)

    mask = mask_ref[...]                                        # [tB, 1, tS] i32

    # MeanPooling partial sums for this sequence tile.  The masked sum runs as
    # a batched MXU contraction ([tB,1,tS] x [tB,tS,H] -> [tB,1,H]); hs stays
    # in its native dtype, accumulation is f32.
    part = jnp.einsum(
        "bms,bsh->bmh",
        mask.astype(hs_ref.dtype),
        hs_ref[...],
        preferred_element_type=jnp.float32,
    )
    acc_ref[...] += part.reshape(acc_ref.shape)                 # [tB, H]
    cnt_ref[...] += jnp.sum(mask.astype(jnp.float32), axis=2)   # [tB, 1]

    @pl.when(k == pl.num_programs(1) - 1)
    def _finalize():
        denom = jnp.maximum(cnt_ref[...], 1e-9)                 # torch.clamp(min=1e-9)
        mean = acc_ref[...] / denom                             # [tB, H]
        # fc: Linear(hidden_size, 2) -> y = x @ W^T + b (W passed pre-transposed)
        out_ref[...] = (
            jnp.dot(mean, w_ref[...], preferred_element_type=jnp.float32)
            + b_ref[...]
        ).astype(out_ref.dtype)


def _pick_batch_tile(B):
    # The output block (tB, 2) puts tB on sublanes, so tB must be a multiple
    # of 8 or the full B.  tB=8 keeps the "parallel" batch axis at >= 2 blocks
    # (v7x megacore) whenever B allows it.
    return 8 if (B % 8 == 0 and B > 8) else B


def _pick_seq_tile(S, tB, H, itemsize, max_tile_bytes):
    # The wrapper guarantees S is either a multiple of 128 or small enough
    # that a single full-S tile fits the budget.
    if S % 128 != 0:
        return S
    cap_rows = max(128, max_tile_bytes // max(1, tB * H * itemsize))
    cap_rows = (cap_rows // 128) * 128
    t = min(cap_rows, S)
    while t >= 128:
        if S % t == 0:
            return t
        t -= 128
    return S


def custom_model_head(last_hidden_state, attention_mask, fc_weight, fc_bias,
                      *, max_tile_bytes=12 << 20, vmem_limit_bytes=48 << 20):
    """last_hidden_state: [B,S,H] f32 or bf16, attention_mask: [B,S] int,
    fc_weight: [2,H] f32 (PyTorch layout), fc_bias: [2] f32. Returns [B,2] f32."""
    B, S, H = last_hidden_state.shape
    itemsize = jnp.dtype(last_hidden_state.dtype).itemsize
    tB = _pick_batch_tile(B)

    attention_mask = attention_mask.astype(jnp.int32)

    # Keep streaming tiling even for awkward S: zero-pad the sequence to a
    # multiple of 128 unless the full-S tile already fits the budget.  Zero
    # mask rows contribute nothing to either accumulator (exact for mean
    # pooling).
    if S % 128 != 0 and tB * S * H * itemsize > max_tile_bytes:
        pad = (-S) % 128
        last_hidden_state = jnp.pad(last_hidden_state, ((0, 0), (0, pad), (0, 0)))
        attention_mask = jnp.pad(attention_mask, ((0, 0), (0, pad)))
        S += pad

    tS = _pick_seq_tile(S, tB, H, itemsize, max_tile_bytes)
    nb = B // tB
    nk = S // tS

    mask3 = attention_mask.reshape(B, 1, S)             # sequence dim on lanes
    w_t = fc_weight.T.astype(jnp.float32)               # [H, 2]
    b = fc_bias.reshape(1, 2).astype(jnp.float32)       # [1, 2]

    cost = pl.CostEstimate(
        flops=2 * B * S * H + 2 * B * H * 2,
        transcendentals=0,
        bytes_accessed=(B * S * H * itemsize            # last_hidden_state
                        + B * S * 4                     # attention_mask
                        + H * 2 * 4 + 2 * 4             # fc params
                        + B * 2 * 4),                   # output
    )

    return pl.pallas_call(
        _head_kernel,
        out_shape=jax.ShapeDtypeStruct((B, 2), jnp.float32),
        grid_spec=pltpu.PrefetchScalarGridSpec(
            num_scalar_prefetch=0,
            grid=(nb, nk),
            in_specs=[
                pl.BlockSpec((tB, tS, H), lambda bi, ki: (bi, ki, 0)),
                pl.BlockSpec((tB, 1, tS), lambda bi, ki: (bi, 0, ki)),
                pl.BlockSpec((H, 2), lambda bi, ki: (0, 0)),
                pl.BlockSpec((1, 2), lambda bi, ki: (0, 0)),
            ],
            out_specs=pl.BlockSpec((tB, 2), lambda bi, ki: (bi, 0)),
            scratch_shapes=[
                pltpu.VMEM((tB, H), jnp.float32),   # sum_embeddings accumulator
                pltpu.VMEM((tB, 1), jnp.float32),   # sum_mask accumulator
            ],
        ),
        compiler_params=pltpu.CompilerParams(
            dimension_semantics=("parallel", "arbitrary"),
            vmem_limit_bytes=vmem_limit_bytes,
        ),
        cost_estimate=cost,
    )(last_hidden_state, mask3, w_t, b)


def _reference(last_hidden_state, attention_mask, fc_weight, fc_bias):
    mask = attention_mask.astype(jnp.float32)[:, :, None]
    sum_emb = jnp.sum(last_hidden_state.astype(jnp.float32) * mask, axis=1)
    sum_mask = jnp.maximum(jnp.sum(mask, axis=1), 1e-9)
    feat = sum_emb / sum_mask
    return feat @ fc_weight.T + fc_bias


if __name__ == "__main__":
    initializer_range = 0.02
    key = jax.random.PRNGKey(0)
    k_hs, k_w, k_hs2, k_hs3 = jax.random.split(key, 4)

    # --- Test 1: small shapes consistent with the module (single grid step) ---
    B, S, H = 2, 8, 32
    last_hidden_state = jax.random.normal(k_hs, (B, S, H), dtype=jnp.float32)
    attention_mask = jnp.array(
        [[1] * S, [1] * (S // 2) + [0] * (S - S // 2)], dtype=jnp.int32
    )
    # fc parameters per CustomModel._init_weights: weight ~ N(0, init_range), bias = 0
    fc_weight = initializer_range * jax.random.normal(k_w, (2, H), dtype=jnp.float32)
    fc_bias = jnp.zeros((2,), dtype=jnp.float32)

    out = custom_model_head(last_hidden_state, attention_mask, fc_weight, fc_bias)
    out = jax.block_until_ready(out)
    ref = _reference(last_hidden_state, attention_mask, fc_weight, fc_bias)
    assert out.shape == (B, 2)
    assert jnp.allclose(out, ref, atol=1e-4, rtol=1e-4)

    # --- Test 2: exercise the streaming (multi-step) sequence reduction ---
    B2, S2, H2 = 2, 256, 128
    hs2 = jax.random.normal(k_hs2, (B2, S2, H2), dtype=jnp.float32)
    lengths = jnp.array([S2, S2 // 3], dtype=jnp.int32)
    pos = jnp.arange(S2, dtype=jnp.int32)[None, :]
    mask2 = (pos < lengths[:, None]).astype(jnp.int32)
    fc_weight2 = initializer_range * jax.random.normal(k_w, (2, H2), dtype=jnp.float32)
    fc_bias2 = jnp.zeros((2,), dtype=jnp.float32)

    # Small tile budget forces tS=128 -> 2 pipelined grid steps over S.
    out2 = custom_model_head(hs2, mask2, fc_weight2, fc_bias2,
                             max_tile_bytes=128 * 1024)
    out2 = jax.block_until_ready(out2)
    ref2 = _reference(hs2, mask2, fc_weight2, fc_bias2)
    assert out2.shape == (B2, 2)
    assert jnp.allclose(out2, ref2, atol=1e-4, rtol=1e-4)

    # --- Test 3: bf16 activations take the native-dtype MXU path ---
    B3, S3, H3 = 2, 128, 64
    hs3 = jax.random.normal(k_hs3, (B3, S3, H3), dtype=jnp.float32).astype(jnp.bfloat16)
    lengths3 = jnp.array([S3, S3 // 2], dtype=jnp.int32)
    mask3 = (jnp.arange(S3, dtype=jnp.int32)[None, :] < lengths3[:, None]).astype(jnp.int32)
    fc_weight3 = initializer_range * jax.random.normal(k_w, (2, H3), dtype=jnp.float32)
    fc_bias3 = jnp.zeros((2,), dtype=jnp.float32)

    out3 = custom_model_head(hs3, mask3, fc_weight3, fc_bias3)
    out3 = jax.block_until_ready(out3)
    ref3 = _reference(hs3, mask3, fc_weight3, fc_bias3)
    assert out3.shape == (B3, 2)
    assert jnp.allclose(out3, ref3, atol=1e-3, rtol=1e-3)

    print("KERNEL_OK")
</pallas_src>

<mosaic_0001>
module attributes {stable_mosaic.version = 11 : i64} {
  func.func @_head_kernel(%arg0: i32, %arg1: i32, %arg2: memref<2x8x32xf32, #tpu.memory_space<vmem>>, %arg3: memref<2x1x8xi32, #tpu.memory_space<vmem>>, %arg4: memref<32x2xf32, #tpu.memory_space<vmem>>, %arg5: memref<1x2xf32, #tpu.memory_space<vmem>>, %arg6: memref<2x2xf32, #tpu.memory_space<vmem>>, %arg7: memref<2x32xf32, #tpu.memory_space<vmem>>, %arg8: memref<2x1xf32, #tpu.memory_space<vmem>>) attributes {dimension_semantics = [#tpu.dimension_semantics<parallel>, #tpu.dimension_semantics<arbitrary>], iteration_bounds = array<i64: 1, 1>, scalar_prefetch = 0 : i64, scratch_operands = 2 : i64, tpu.core_type = #tpu.core_type<tc>, window_params = [{transform_indices = @transform_0, window_bounds = array<i64: 2, 8, 32>}, {transform_indices = @transform_1, window_bounds = array<i64: 2, 1, 8>}, {pipeline_mode = #tpu.pipeline_mode<synchronous>, transform_indices = @transform_2, window_bounds = array<i64: 32, 2>}, {pipeline_mode = #tpu.pipeline_mode<synchronous>, transform_indices = @transform_3, window_bounds = array<i64: 1, 2>}, {transform_indices = @transform_4, window_bounds = array<i64: 2, 2>}]} {
    %c0_i32 = arith.constant 0 : i32
    %0 = arith.cmpi eq, %arg1, %c0_i32 : i32
    %1 = arith.extui %0 : i1 to i32
    %c0_i32_0 = arith.constant 0 : i32
    %2 = arith.cmpi ne, %1, %c0_i32_0 : i32
    scf.if %2 {
      %cst_17 = arith.constant 0.000000e+00 : f32
      %19 = vector.broadcast %cst_17 : f32 to vector<2x32xf32>
      %c0_18 = arith.constant 0 : index
      %c0_19 = arith.constant 0 : index
      %20 = vector.load %arg7[%c0_18, %c0_19] : memref<2x32xf32, #tpu.memory_space<vmem>>, vector<2x32xf32>
      tpu.vector_store %arg7[%c0_18, %c0_19], %19 {strides = array<i32>} : memref<2x32xf32, #tpu.memory_space<vmem>>, vector<2x32xf32>,
      %cst_20 = arith.constant 0.000000e+00 : f32
      %21 = vector.broadcast %cst_20 : f32 to vector<2x1xf32>
      %c0_21 = arith.constant 0 : index
      %c0_22 = arith.constant 0 : index
      %22 = vector.load %arg8[%c0_21, %c0_22] : memref<2x1xf32, #tpu.memory_space<vmem>>, vector<2x1xf32>
      tpu.vector_store %arg8[%c0_21, %c0_22], %21 {strides = array<i32>} : memref<2x1xf32, #tpu.memory_space<vmem>>, vector<2x1xf32>,
    } else {
    }
    %c0 = arith.constant 0 : index
    %c0_1 = arith.constant 0 : index
    %c0_2 = arith.constant 0 : index
    %3 = vector.load %arg3[%c0, %c0_1, %c0_2] : memref<2x1x8xi32, #tpu.memory_space<vmem>>, vector<2x1x8xi32>
    %4 = arith.sitofp %3 : vector<2x1x8xi32> to vector<2x1x8xf32>
    %c0_3 = arith.constant 0 : index
    %c0_4 = arith.constant 0 : index
    %c0_5 = arith.constant 0 : index
    %5 = vector.load %arg2[%c0_3, %c0_4, %c0_5] : memref<2x8x32xf32, #tpu.memory_space<vmem>>, vector<2x8x32xf32>
    "tpu.trace_start"() <{level = 10 : i32, message = "bms,bsh->bmh"}> : () -> ()
    %cst = arith.constant dense<0.000000e+00> : vector<2x1x32xf32>
    %6 = tpu.matmul %4, %5, %cst {dimension_numbers = #tpu.dot_dimension_numbers<[2], [1], [1], [2], [0, 0, 0, 1, 1, 2], [0], [0]>} : vector<2x1x8xf32>, vector<2x8x32xf32>, vector<2x1x32xf32> -> vector<2x1x32xf32>
    "tpu.trace_stop"() : () -> ()
    %c0_6 = arith.constant 0 : index
    %c0_7 = arith.constant 0 : index
    %7 = vector.load %arg7[%c0_6, %c0_7] : memref<2x32xf32, #tpu.memory_space<vmem>>, vector<2x32xf32>
    %8 = vector.shape_cast %6 : vector<2x1x32xf32> to vector<2x32xf32>
    %9 = arith.addf %7, %8 : vector<2x32xf32>
    %c0_8 = arith.constant 0 : index
    %c0_9 = arith.constant 0 : index
    %10 = vector.load %arg7[%c0_8, %c0_9] : memref<2x32xf32, #tpu.memory_space<vmem>>, vector<2x32xf32>
    tpu.vector_store %arg7[%c0_8, %c0_9], %9 {strides = array<i32>} : memref<2x32xf32, #tpu.memory_space<vmem>>, vector<2x32xf32>,
    %c0_10 = arith.constant 0 : index
    %c0_11 = arith.constant 0 : index
    %11 = vector.load %arg8[%c0_10, %c0_11] : memref<2x1xf32, #tpu.memory_space<vmem>>, vector<2x1xf32>
    %12 = arith.sitofp %3 : vector<2x1x8xi32> to vector<2x1x8xf32>
    %cst_12 = arith.constant dense<0.000000e+00> : vector<2x1xf32>
    %13 = vector.multi_reduction <add>, %12, %cst_12 [2] : vector<2x1x8xf32> to vector<2x1xf32>
    %14 = arith.addf %11, %13 : vector<2x1xf32>
    %c0_13 = arith.constant 0 : index
    %c0_14 = arith.constant 0 : index
    %15 = vector.load %arg8[%c0_13, %c0_14] : memref<2x1xf32, #tpu.memory_space<vmem>>, vector<2x1xf32>
    tpu.vector_store %arg8[%c0_13, %c0_14], %14 {strides = array<i32>} : memref<2x1xf32, #tpu.memory_space<vmem>>, vector<2x1xf32>,
    %c0_i32_15 = arith.constant 0 : i32
    %16 = arith.cmpi eq, %arg1, %c0_i32_15 : i32
    %17 = arith.extui %16 : i1 to i32
    %c0_i32_16 = arith.constant 0 : i32
    %18 = arith.cmpi ne, %17, %c0_i32_16 : i32
    scf.if %18 {
      %c0_17 = arith.constant 0 : index
      %c0_18 = arith.constant 0 : index
      %19 = vector.load %arg8[%c0_17, %c0_18] : memref<2x1xf32, #tpu.memory_space<vmem>>, vector<2x1xf32>
      %cst_19 = arith.constant 9.99999971E-10 : f32
      %20 = vector.broadcast %cst_19 : f32 to vector<2x1xf32>
      %21 = arith.maximumf %19, %20 : vector<2x1xf32>
      %c0_20 = arith.constant 0 : index
      %c0_21 = arith.constant 0 : index
      %22 = vector.load %arg7[%c0_20, %c0_21] : memref<2x32xf32, #tpu.memory_space<vmem>>, vector<2x32xf32>
      %23 = vector.broadcast %21 : vector<2x1xf32> to vector<2x32xf32>
      %24 = arith.divf %22, %23 : vector<2x32xf32>
      %c0_22 = arith.constant 0 : index
      %c0_23 = arith.constant 0 : index
      %25 = vector.load %arg4[%c0_22, %c0_23] : memref<32x2xf32, #tpu.memory_space<vmem>>, vector<32x2xf32>
      %cst_24 = arith.constant dense<0.000000e+00> : vector<2x2xf32>
      %26 = tpu.matmul %24, %25, %cst_24 {dimension_numbers = #tpu.dot_dimension_numbers<[1], [0], [0], [1], [0, 0, 1, 1], [], []>} : vector<2x32xf32>, vector<32x2xf32>, vector<2x2xf32> -> vector<2x2xf32>
      %c0_25 = arith.constant 0 : index
      %c0_26 = arith.constant 0 : index
      %27 = vector.load %arg5[%c0_25, %c0_26] : memref<1x2xf32, #tpu.memory_space<vmem>>, vector<1x2xf32>
      %28 = vector.broadcast %27 : vector<1x2xf32> to vector<2x2xf32>
      %29 = arith.addf %26, %28 : vector<2x2xf32>
      %c0_27 = arith.constant 0 : index
      %c0_28 = arith.constant 0 : index
      %30 = vector.load %arg6[%c0_27, %c0_28] : memref<2x2xf32, #tpu.memory_space<vmem>>, vector<2x2xf32>
      tpu.vector_store %arg6[%c0_27, %c0_28], %29 {strides = array<i32>} : memref<2x2xf32, #tpu.memory_space<vmem>>, vector<2x2xf32>,
    } else {
    }
    return
  }
  func.func @transform_0(%arg0: i32, %arg1: i32) -> (i32, i32, i32) {
    %c0_i32 = arith.constant 0 : i32
    %c0_i32_0 = arith.constant 0 : i32
    return %arg0, %arg1, %c0_i32 : i32, i32, i32
  }
  func.func @transform_1(%arg0: i32, %arg1: i32) -> (i32, i32, i32) {
    %c0_i32 = arith.constant 0 : i32
    %c0_i32_0 = arith.constant 0 : i32
    return %arg0, %c0_i32, %arg1 : i32, i32, i32
  }
  func.func @transform_2(%arg0: i32, %arg1: i32) -> (i32, i32) {
    %c0_i32 = arith.constant 0 : i32
    %c0_i32_0 = arith.constant 0 : i32
    %c0_i32_1 = arith.constant 0 : i32
    return %c0_i32, %c0_i32_0 : i32, i32
  }
  func.func @transform_3(%arg0: i32, %arg1: i32) -> (i32, i32) {
    %c0_i32 = arith.constant 0 : i32
    %c0_i32_0 = arith.constant 0 : i32
    %c0_i32_1 = arith.constant 0 : i32
    return %c0_i32, %c0_i32_0 : i32, i32
  }
  func.func @transform_4(%arg0: i32, %arg1: i32) -> (i32, i32) {
    %c0_i32 = arith.constant 0 : i32
    %c0_i32_0 = arith.constant 0 : i32
    return %arg0, %c0_i32 : i32, i32
  }
}

</mosaic_0001>

<llo_original>
// kernel: tpu_custom_call.1
$region0: #{tpu_custom_call.1}
  #allocation0 [shape = 'u32[]', space=smem, size = 0x4, offset = 0x4, fixed_abs, tag = 'smem constant byte address 0x4 - core index']
  #allocation1 [shape = 'u32[72,128]{1,0:T(1,128)}', space=vmem, size = 0x9000, scoped, tag = 'internal scratch']
  #allocation2 [shape = 'f32[2,32]{1,0:T(2,128)}', space=vmem, size = 0x400, scoped, tag = 'scratch operand']
  #allocation3 [shape = 'f32[2,1]{1,0:T(2,128)}', space=vmem, size = 0x400, scoped, tag = 'scratch operand']
  %s0 = inlined_call_operand.vmem [shape: f32[2,8,32], index: 0, kind: input, shape index: {}]
  %s1 = inlined_call_operand.vmem [shape: s32[2,1,8], index: 1, kind: input, shape index: {}]
  %s2 = inlined_call_operand.vmem [shape: f32[32,2], index: 2, kind: input, shape index: {}]
  %s3 = inlined_call_operand.vmem [shape: f32[1,2], index: 3, kind: input, shape index: {}]
  %s4 = inlined_call_operand.hbm [shape: f32[2,2], index: 4, kind: output, shape index: {}]
  %s5 = sld [smem:[#allocation0]]
  $region34: #{tpu_custom_call.1} parent=0
    _
  %s7 = ssub.s32 1, %s5
  %s8 = scalar_select 0, %s7, %s5
  $region1: #{tpu_custom_call.1} parent=0
    #allocation4 [shape = 'u8[1024]{0}', space=vmem, size = 0x400, scoped, tag = 'output window, operand 0, single buffered']
    #allocation5 [shape = 's32[1]{0}', space=sflag, size = 0x4, scoped, tag = 'scoped memory for tpu_custom_call.1']
    %9 = vsyncpa [#allocation5], 0
    // Predicated region
    $region2: #{tpu_custom_call.1} parent=1 // pred_check
      _
    $region3: #{tpu_custom_call.1} parent=1 // pred_check_branch
      %11 = sbr.rel (0) target = $region5
    $region4: #{tpu_custom_call.1} parent=1 // pred_region
      _
    $region5: #{tpu_custom_call.1} parent=1 // pred_fallthru
      _
    // Predicated region
    $region6: #{tpu_custom_call.1} parent=1 // pred_check
      _
    $region7: #{tpu_custom_call.1} parent=1 // pred_check_branch
      %13 = sbr.rel (0) target = $region9
    $region8: #{tpu_custom_call.1} parent=1 // pred_region
      _
    $region9: #{tpu_custom_call.1} parent=1 // pred_fallthru
      _
    // Predicated region
    $region10: #{tpu_custom_call.1} parent=1 // pred_check
      _
    $region11: #{tpu_custom_call.1} parent=1 // pred_check_branch
      %15 = sbr.rel (0) target = $region13
    $region12: #{tpu_custom_call.1} parent=1 // pred_region
      _
    $region13: #{tpu_custom_call.1} parent=1 // pred_fallthru
      _
    // Predicated region
    $region14: #{tpu_custom_call.1} parent=1 // pred_check
      _
    $region15: #{tpu_custom_call.1} parent=1 // pred_check_branch
      %17 = sbr.rel (0) target = $region17
    $region16: #{tpu_custom_call.1} parent=1 // pred_region
      _
    $region17: #{tpu_custom_call.1} parent=1 // pred_fallthru
      _
    %p18 = scmp.eq.s32.totalorder 0, 0
    // Predicated region
    $region18: #{tpu_custom_call.1} parent=1 // pred_check
      %p19 = pneg %p18
    $region19: #{tpu_custom_call.1} parent=1 // pred_check_branch
      %21 = sbr.rel (%p19) target = $region21
    $region20: #{tpu_custom_call.1} parent=1 // pred_region
      %vm22 = vcmask 254976
      %23 = vst.msk [vmem:[#allocation2] sm:$0x3] %vm22, 0.0
      %vm24 = vcmask 1024
      %25 = vst.msk [vmem:[#allocation3] sm:$0x3] %vm24, 0.0
    $region21: #{tpu_custom_call.1} parent=1 // pred_fallthru
      _
    %v26 = vld [vmem:[%s1] sm:$0x1]
    %v27 = vld [vmem:[%s1 + $0x1] sm:$0x1]
    %v28 = vcvt.s32.f32 %v26
    %v29 = vcvt.s32.f32 %v27
    %v30 = vld [vmem:[%s0] sm:$0xff]
    %v31 = vld [vmem:[%s0 + $0x8] sm:$0xff]
    %vm32 = vcmask 64512
    %v34 = vsel %vm32, %v28, 0
    %36 = vmatpush.msra.mxu0 0.0
    %37 = vmatpush.msra.mxu0 0.0
    %38 = vmatpush.msra.mxu0 0.0
    %39 = vmatpush.msra.mxu0 0.0
    %40 = vmatpush.msra.mxu0 0.0
    %41 = vmatpush.msra.mxu0 0.0
    %42 = vmatpush.msra.mxu0 0.0
    %43 = vmatpush.msra.mxu0 0.0
    %44 = vmatpush.msra.mxu0 0.0
    %45 = vmatpush.msra.mxu0 0.0
    %46 = vmatpush.msra.mxu0 0.0
    %47 = vmatpush.msra.mxu0 0.0
    %48 = vmatpush.msra.mxu0 0.0
    %49 = vmatpush.msra.mxu0 0.0
    %50 = vmatpush.msra.mxu0 0.0
    %51 = vmatpush.msra.mxu0 %v30
    %52 = vmatmul.f32.gmra.mxu0 %v34
    %v53 = vpop.f32.mrf.mxu0
    %v54 = vadd.f32 0.0, %v53
    %55 = vdwg.mxu0
    %v57 = vsel %vm32, %v29, 0
    %59 = vmatpush.msra.mxu0 0.0
    %60 = vmatpush.msra.mxu0 0.0
    %61 = vmatpush.msra.mxu0 0.0
    %62 = vmatpush.msra.mxu0 0.0
    %63 = vmatpush.msra.mxu0 0.0
    %64 = vmatpush.msra.mxu0 0.0
    %65 = vmatpush.msra.mxu0 0.0
    %66 = vmatpush.msra.mxu0 0.0
    %67 = vmatpush.msra.mxu0 0.0
    %68 = vmatpush.msra.mxu0 0.0
    %69 = vmatpush.msra.mxu0 0.0
    %70 = vmatpush.msra.mxu0 0.0
    %71 = vmatpush.msra.mxu0 0.0
    %72 = vmatpush.msra.mxu0 0.0
    %73 = vmatpush.msra.mxu0 0.0
    %74 = vmatpush.msra.mxu0 %v31
    %75 = vmatmul.f32.gmra.mxu0 %v57
    %v76 = vpop.f32.mrf.mxu0
    %v77 = vadd.f32 0.0, %v76
    %78 = vdwg.mxu0
    %v79 = vld [vmem:[#allocation2] sm:$0x3]
    %v82 = vrot.slane %v77, 7
    %vm83 = vcmask 1041409
    %v84 = vsel %vm83, %v82, %v54
    %v86 = vadd.f32 %v79, %v84
    %vm87 = vcmask 254976
    %88 = vst.msk [vmem:[#allocation2] sm:$0x3] %vm87, %v86
    %v89 = vld [vmem:[#allocation3] sm:$0x3]
    %vm90 = vcmask 57344
    %v91 = vsel %vm90, %v28, 0.0
    %92 = vadd.xlane.f32.xlu0 %v91
    %v93 = vpop.xlane.xlu0 %92
    %v94 = vsel %vm90, %v29, 0.0
    %95 = vadd.xlane.f32.xlu0 %v94
    %v96 = vpop.xlane.xlu0 %95
    %v99 = vrot.slane %v96, 7
    %v100 = vsel %vm83, %v99, %v93
    %v102 = vadd.f32 %v89, %v100
    %vm103 = vcmask 1024
    %104 = vst.msk [vmem:[#allocation3] sm:$0x3] %vm103, %v102
    // Predicated region
    $region22: #{tpu_custom_call.1} parent=1 // pred_check
      %p105 = pneg %p18
    $region23: #{tpu_custom_call.1} parent=1 // pred_check_branch
      %107 = sbr.rel (%p105) target = $region25
    $region24: #{tpu_custom_call.1} parent=1 // pred_region
      %v108 = vld [vmem:[#allocation3] sm:$0x3]
      %v109 = vmax.f32 %v108, 1e-09
      %v110 = vld [vmem:[#allocation2] sm:$0x3]
      %112 = vset.pattern.permute.xlu0 0
      %113 = vperm.xlu0 %112, %v109
      %v114 = vpop.permute.xlu0 %113
      %v116 = vrcp.pop %v114
      %v117 = vmul.f32 %v114, %v116
      %v118 = vsub.f32 1.0, %v117
      %v119 = vmul.f32 %v116, %v118
      %v120 = vadd.f32 %v116, %v119
      %vm121 = vweird.f32 %v114
      %vm122 = vweird.f32 %v116
      %vm123 = vmor %vm121, %vm122
      %v124 = vsel %vm123, %v116, %v120
      %v125 = vand.u32 2147483647, %v114
      %vm126 = vcmp.eq.f32.partialorder %v125, 8.507059e+37
      %v127 = vand.u32 %v114, 2147483648
      %v128 = vor.u32 1.1754944e-38, %v127
      %v129 = vsel %vm126, %v128, %v124
      %v130 = vmul.f32 %v110, %v129
      %v131 = vld [vmem:[%s2] sm:$0xff]
      %v132 = vld [vmem:[%s2 + $0x8] sm:$0xff]
      %v133 = vld [vmem:[%s2 + $0x10] sm:$0xff]
      %v134 = vld [vmem:[%s2 + $0x18] sm:$0xff]
      %v135 = vld [vmem:[%s3] sm:$0x1]
      %v137 = vperm.slane %v135, 0
      %vm139 = vcmask 261120
      %v141 = vsel %vm139, %v130, 0
      %143 = vmatpush.msra.mxu0 0.0
      %144 = vmatpush.msra.mxu0 0.0
      %145 = vmatpush.msra.mxu0 0.0
      %146 = vmatpush.msra.mxu0 0.0
      %147 = vmatpush.msra.mxu0 0.0
      %148 = vmatpush.msra.mxu0 0.0
      %149 = vmatpush.msra.mxu0 0.0
      %150 = vmatpush.msra.mxu0 0.0
      %151 = vmatpush.msra.mxu0 0.0
      %152 = vmatpush.msra.mxu0 0.0
      %153 = vmatpush.msra.mxu0 0.0
      %154 = vmatpush.msra.mxu0 0.0
      %155 = vmatpush.msra.mxu0 %v134
      %156 = vmatpush.msra.mxu0 %v133
      %157 = vmatpush.msra.mxu0 %v132
      %158 = vmatpush.msra.mxu0 %v131
      %159 = vmatmul.f32.gmra.mxu0 %v141
      %v160 = vpop.f32.mrf.mxu0
      %v161 = vadd.f32 %v137, %v160
      %162 = vdwg.mxu0
      %vm163 = vcmask 9216
      %164 = vst.msk [vmem:[#allocation4] sm:$0x3] %vm163, %v161
    $region25: #{tpu_custom_call.1} parent=1 // pred_fallthru
      _
    // Predicated region
    $region26: #{tpu_custom_call.1} parent=1 // pred_check
      _
    $region27: #{tpu_custom_call.1} parent=1 // pred_check_branch
      %166 = sbr.rel (0) target = $region29
    $region28: #{tpu_custom_call.1} parent=1 // pred_region
      %168 = vsyncadd [#allocation5], 0
      %s170 = sshll.u32 [#allocation4], 4
      %s171 = int_to_ptr.vmem [resolvable:$true] %s170
      %s172 = sshll.u32 %s4, 4
      %s173 = int_to_ptr.hbm [resolvable:$true] %s172
      %175 = dma.vmem_to_hbm [thread:$0]  %s171, 32, %s173, [#allocation5]
    $region29: #{tpu_custom_call.1} parent=1 // pred_fallthru
      _
    // Predicated region
    $region30: #{tpu_custom_call.1} parent=1 // pred_check
      _
    $region31: #{tpu_custom_call.1} parent=1 // pred_check_branch
      %177 = sbr.rel (0) target = $region33
    $region32: #{tpu_custom_call.1} parent=1 // pred_region
      %179 = dma.done [#allocation5], 32
    $region33: #{tpu_custom_call.1} parent=1 // pred_fallthru
      _
    %180 = vsyncpa [#allocation5], 1

</llo_original>
